<compile_context>
chip_gen: v7x
topology: tpu7x:2x2x1
jax: 0.10.0
libtpu: 0.0.40
codegen_flags: <defaults>
</compile_context>

<pallas_src>
import functools

import jax
import jax.numpy as jnp
from jax import lax
from jax.experimental import pallas as pl
from jax.experimental.pallas import tpu as pltpu


_LANE = 128


def _round_up(x, m):
    return (x + m - 1) // m * m


def _fused_bn_conv_kernel(patch_ref, w_ref, gb_ref, out_ref, stats_ref, *, inv_m, eps):
    """Grid (pass, row_tile). pass 0: accumulate sum/sumsq of y. pass 1: out = relu(BN(y))."""
    p = pl.program_id(0)   # 0 = stats pass, 1 = normalize/apply pass
    i = pl.program_id(1)   # row-tile index

    # Conv tile (needed in both passes): MXU matmul with f32 accumulation.
    y = jnp.dot(patch_ref[...], w_ref[...], preferred_element_type=jnp.float32)

    @pl.when(p == 0)
    def _stats_pass():
        @pl.when(i == 0)
        def _():
            stats_ref[...] = jnp.zeros_like(stats_ref)

        s = jnp.sum(y, axis=0, keepdims=True)         # (1, C_pad)
        sq = jnp.sum(y * y, axis=0, keepdims=True)    # (1, C_pad)
        stats_ref[...] += jnp.concatenate([s, sq], axis=0)

    @pl.when(p == 1)
    def _apply_pass():
        @pl.when(i == 0)
        def _():
            # Fold batch stats + gamma/beta into per-channel scale/shift, in place.
            mean = stats_ref[0:1, :] * jnp.float32(inv_m)
            var = jnp.maximum(stats_ref[1:2, :] * jnp.float32(inv_m) - mean * mean, 0.0)
            inv_std = lax.rsqrt(var + jnp.float32(eps))
            scale = gb_ref[0:1, :] * inv_std           # gamma * inv_std
            shift = gb_ref[1:2, :] - mean * scale      # beta - mean * scale
            stats_ref[0:1, :] = scale
            stats_ref[1:2, :] = shift

        out_ref[...] = jnp.maximum(y * stats_ref[0:1, :] + stats_ref[1:2, :], 0.0)


def _im2col(x, kh, kw, pad):
    # x: (N, C, H, W) -> patches (N*H_out*W_out, C*kh*kw); feature order (C, kh, kw)
    # matches PyTorch conv weight.reshape(C_out, -1).
    n, c, h, w = x.shape
    xp = jnp.pad(x, ((0, 0), (0, 0), (pad, pad), (pad, pad)))
    h_out = h + 2 * pad - kh + 1
    w_out = w + 2 * pad - kw + 1
    slices = [xp[:, :, i:i + h_out, j:j + w_out] for i in range(kh) for j in range(kw)]
    pat = jnp.stack(slices, axis=2)                      # (N, C, kh*kw, H_out, W_out)
    pat = jnp.transpose(pat, (0, 3, 4, 1, 2))            # (N, H_out, W_out, C, kh*kw)
    return pat.reshape(n * h_out * w_out, c * kh * kw), h_out, w_out


def batch_norm_conv2d(x, conv_w, conv_b, bn_gamma, bn_beta, *, padding=1, tm=512):
    """x: (N, C_in, H, W) NCHW. conv_w: (C_out, C_in, KH, KW). Returns NCHW output."""
    del conv_b  # Mathematically a no-op: BatchNorm's mean subtraction cancels the conv bias.
    n, c_in, h, w = x.shape
    c_out, _, kh, kw = conv_w.shape
    assert tm % 8 == 0, "row tile must be a multiple of 8 (f32 sublane)"

    # bf16 patch stream (halves HBM bytes); conv accumulates in f32 on the MXU.
    patches, h_out, w_out = _im2col(x.astype(jnp.bfloat16), kh, kw, padding)
    m, k = patches.shape

    m_pad = _round_up(m, tm)
    c_pad = _round_up(c_out, _LANE)

    # Zero-padded rows produce y == 0 exactly (no bias), so they contribute nothing to the stats.
    patches = jnp.pad(patches, ((0, m_pad - m), (0, 0)))

    w_mat = conv_w.reshape(c_out, c_in * kh * kw).T.astype(jnp.bfloat16)     # (K, C_out)
    w_mat = jnp.pad(w_mat, ((0, 0), (0, c_pad - c_out)))                     # (K, C_pad)

    # gamma / beta stacked as one lane-padded (2, C_pad) f32 operand (resident in VMEM).
    gamma_row = jnp.pad(bn_gamma.astype(jnp.float32).reshape(1, c_out),
                        ((0, 0), (0, c_pad - c_out)))
    beta_row = jnp.pad(bn_beta.astype(jnp.float32).reshape(1, c_out),
                       ((0, 0), (0, c_pad - c_out)))
    gb = jnp.concatenate([gamma_row, beta_row], axis=0)                      # (2, C_pad)

    n_tiles = m_pad // tm
    grid = (2, n_tiles)  # (pass, row-tile); row-tile is the fast axis

    kernel = functools.partial(_fused_bn_conv_kernel, inv_m=1.0 / float(m), eps=1e-3)

    cost = pl.CostEstimate(
        flops=2 * (2 * m_pad * k * c_pad),   # conv recomputed in both passes
        transcendentals=0,
        bytes_accessed=(2 * patches.size * 2        # patch stream read twice (bf16)
                        + w_mat.size * 2            # weights (bf16), resident
                        + gb.size * 4
                        + m_pad * c_pad * 4),       # final output (f32)
    )

    out_flat = pl.pallas_call(
        kernel,
        out_shape=jax.ShapeDtypeStruct((m_pad, c_pad), jnp.float32),
        grid=grid,
        in_specs=[
            pl.BlockSpec((tm, k), lambda p, i: (i, 0)),       # patch tiles (double-buffered)
            pl.BlockSpec((k, c_pad), lambda p, i: (0, 0)),    # weights, resident
            pl.BlockSpec((2, c_pad), lambda p, i: (0, 0)),    # gamma/beta, resident
        ],
        # During pass 0 every step maps to block 0 (held, never written -> no HBM writeback);
        # pass 1 walks the blocks and stores the final lane-dense tiles.
        out_specs=pl.BlockSpec((tm, c_pad), lambda p, i: (i * p, 0)),
        scratch_shapes=[pltpu.VMEM((2, c_pad), jnp.float32)],  # [sum; sumsq] -> [scale; shift]
        compiler_params=pltpu.CompilerParams(
            dimension_semantics=("arbitrary", "arbitrary")),
        cost_estimate=cost,
    )(patches, w_mat, gb)

    out = out_flat[:m, :c_out].reshape(n, h_out, w_out, c_out)
    return jnp.transpose(out, (0, 3, 1, 2))  # back to NCHW


def _reference(x, conv_w, conv_b, bn_gamma, bn_beta, padding=1):
    y = lax.conv_general_dilated(
        x.astype(jnp.float32), conv_w.astype(jnp.float32),
        window_strides=(1, 1), padding=[(padding, padding), (padding, padding)],
        dimension_numbers=("NCHW", "OIHW", "NCHW"))
    y = y + conv_b.reshape(1, -1, 1, 1)
    mean = jnp.mean(y, axis=(0, 2, 3), keepdims=True)
    var = jnp.mean((y - mean) ** 2, axis=(0, 2, 3), keepdims=True)
    y = (y - mean) * lax.rsqrt(var + 1e-3)
    y = y * bn_gamma.reshape(1, -1, 1, 1) + bn_beta.reshape(1, -1, 1, 1)
    return jnp.maximum(y, 0.0)


if __name__ == "__main__":
    key = jax.random.PRNGKey(0)
    k1, k2, k3 = jax.random.split(key, 3)

    # Small shapes consistent with the module: Conv2d(in=4, out=8, kernel_size=3, padding=1)
    N, C_IN, H, W = 2, 4, 16, 16
    C_OUT, KH, KW = 8, 3, 3

    x = jax.random.normal(k1, (N, C_IN, H, W), dtype=jnp.float32)
    fan_in = C_IN * KH * KW
    bound = 1.0 / (fan_in ** 0.5)
    conv_w = jax.random.uniform(k2, (C_OUT, C_IN, KH, KW), minval=-bound, maxval=bound,
                                dtype=jnp.float32)
    conv_b = jax.random.uniform(k3, (C_OUT,), minval=-bound, maxval=bound, dtype=jnp.float32)
    bn_gamma = jnp.ones((C_OUT,), jnp.float32)   # PyTorch BatchNorm2d default init
    bn_beta = jnp.zeros((C_OUT,), jnp.float32)

    # M = N*H_out*W_out = 512; tm=128 gives a 4-tile row grid (grid = (2, 4)) and exercises
    # both the stats accumulation and the in-kernel scale/shift fold.
    out = batch_norm_conv2d(x, conv_w, conv_b, bn_gamma, bn_beta, padding=1, tm=128)
    out = jax.block_until_ready(out)

    ref = _reference(x, conv_w, conv_b, bn_gamma, bn_beta, padding=1)
    assert out.shape == (N, C_OUT, H, W)
    max_err = float(jnp.max(jnp.abs(out - ref)))
    # bf16 patch/weight stream vs f32 reference conv -> loose elementwise tolerance.
    assert max_err < 5e-2, f"mismatch vs reference: max abs err = {max_err}"

    print("KERNEL_OK")
</pallas_src>

<mosaic_0001>
module attributes {stable_mosaic.version = 11 : i64} {
  func.func @_fused_bn_conv_kernel(%arg0: i32, %arg1: i32, %arg2: memref<128x36xbf16, #tpu.memory_space<vmem>>, %arg3: memref<36x128xbf16, #tpu.memory_space<vmem>>, %arg4: memref<2x128xf32, #tpu.memory_space<vmem>>, %arg5: memref<128x128xf32, #tpu.memory_space<vmem>>, %arg6: memref<2x128xf32, #tpu.memory_space<vmem>>) attributes {dimension_semantics = [#tpu.dimension_semantics<arbitrary>, #tpu.dimension_semantics<arbitrary>], iteration_bounds = array<i64: 2, 4>, scalar_prefetch = 0 : i64, scratch_operands = 1 : i64, tpu.core_type = #tpu.core_type<tc>, window_params = [{transform_indices = @transform_0, window_bounds = array<i64: 128, 36>}, {pipeline_mode = #tpu.pipeline_mode<synchronous>, transform_indices = @transform_1, window_bounds = array<i64: 36, 128>}, {pipeline_mode = #tpu.pipeline_mode<synchronous>, transform_indices = @transform_2, window_bounds = array<i64: 2, 128>}, {transform_indices = @transform_3, window_bounds = array<i64: 128, 128>}]} {
    %c0 = arith.constant 0 : index
    %c0_0 = arith.constant 0 : index
    %0 = vector.load %arg2[%c0, %c0_0] : memref<128x36xbf16, #tpu.memory_space<vmem>>, vector<128x36xbf16>
    %c0_1 = arith.constant 0 : index
    %c0_2 = arith.constant 0 : index
    %1 = vector.load %arg3[%c0_1, %c0_2] : memref<36x128xbf16, #tpu.memory_space<vmem>>, vector<36x128xbf16>
    %cst = arith.constant dense<0.000000e+00> : vector<128x128xf32>
    %2 = tpu.matmul %0, %1, %cst {dimension_numbers = #tpu.dot_dimension_numbers<[1], [0], [0], [1], [0, 0, 1, 1], [], []>} : vector<128x36xbf16>, vector<36x128xbf16>, vector<128x128xf32> -> vector<128x128xf32>
    %c0_i32 = arith.constant 0 : i32
    %3 = arith.cmpi eq, %arg0, %c0_i32 : i32
    %4 = arith.extui %3 : i1 to i32
    %c0_i32_3 = arith.constant 0 : i32
    %5 = arith.cmpi ne, %4, %c0_i32_3 : i32
    scf.if %5 {
      %c0_i32_5 = arith.constant 0 : i32
      %9 = arith.cmpi eq, %arg1, %c0_i32_5 : i32
      %10 = arith.extui %9 : i1 to i32
      %c0_i32_6 = arith.constant 0 : i32
      %11 = arith.cmpi ne, %10, %c0_i32_6 : i32
      scf.if %11 {
        %cst_13 = arith.constant 0.000000e+00 : f32
        %21 = vector.broadcast %cst_13 : f32 to vector<2x128xf32>
        %c0_14 = arith.constant 0 : index
        %c0_15 = arith.constant 0 : index
        %22 = vector.load %arg6[%c0_14, %c0_15] : memref<2x128xf32, #tpu.memory_space<vmem>>, vector<2x128xf32>
        tpu.vector_store %arg6[%c0_14, %c0_15], %21 {strides = array<i32>} : memref<2x128xf32, #tpu.memory_space<vmem>>, vector<2x128xf32>,
      } else {
      }
      %cst_7 = arith.constant dense<0.000000e+00> : vector<128xf32>
      %12 = vector.multi_reduction <add>, %2, %cst_7 [0] : vector<128x128xf32> to vector<128xf32>
      %13 = vector.shape_cast %12 : vector<128xf32> to vector<1x128xf32>
      %14 = arith.mulf %2, %2 : vector<128x128xf32>
      %cst_8 = arith.constant dense<0.000000e+00> : vector<128xf32>
      %15 = vector.multi_reduction <add>, %14, %cst_8 [0] : vector<128x128xf32> to vector<128xf32>
      %16 = vector.shape_cast %15 : vector<128xf32> to vector<1x128xf32>
      %c0_9 = arith.constant 0 : index
      %c0_10 = arith.constant 0 : index
      %17 = vector.load %arg6[%c0_9, %c0_10] : memref<2x128xf32, #tpu.memory_space<vmem>>, vector<2x128xf32>
      %18 = tpu.concatenate %13, %16 in 0 : vector<1x128xf32>, vector<1x128xf32> -> vector<2x128xf32>
      %19 = arith.addf %17, %18 : vector<2x128xf32>
      %c0_11 = arith.constant 0 : index
      %c0_12 = arith.constant 0 : index
      %20 = vector.load %arg6[%c0_11, %c0_12] : memref<2x128xf32, #tpu.memory_space<vmem>>, vector<2x128xf32>
      tpu.vector_store %arg6[%c0_11, %c0_12], %19 {strides = array<i32>} : memref<2x128xf32, #tpu.memory_space<vmem>>, vector<2x128xf32>,
    } else {
    }
    %c1_i32 = arith.constant 1 : i32
    %6 = arith.cmpi eq, %arg0, %c1_i32 : i32
    %7 = arith.extui %6 : i1 to i32
    %c0_i32_4 = arith.constant 0 : i32
    %8 = arith.cmpi ne, %7, %c0_i32_4 : i32
    scf.if %8 {
      %c0_i32_5 = arith.constant 0 : i32
      %9 = arith.cmpi eq, %arg1, %c0_i32_5 : i32
      %10 = arith.extui %9 : i1 to i32
      %c0_i32_6 = arith.constant 0 : i32
      %11 = arith.cmpi ne, %10, %c0_i32_6 : i32
      scf.if %11 {
        %c0_13 = arith.constant 0 : index
        %c0_14 = arith.constant 0 : index
        %21 = vector.load %arg6[%c0_13, %c0_14] : memref<2x128xf32, #tpu.memory_space<vmem>>, vector<1x128xf32>
        %cst_15 = arith.constant 0.001953125 : f32
        %22 = vector.broadcast %cst_15 : f32 to vector<1x128xf32>
        %23 = arith.mulf %21, %22 : vector<1x128xf32>
        %c1_16 = arith.constant 1 : index
        %c0_17 = arith.constant 0 : index
        %24 = vector.load %arg6[%c1_16, %c0_17] : memref<2x128xf32, #tpu.memory_space<vmem>>, vector<1x128xf32>
        %cst_18 = arith.constant 0.001953125 : f32
        %25 = vector.broadcast %cst_18 : f32 to vector<1x128xf32>
        %26 = arith.mulf %24, %25 : vector<1x128xf32>
        %27 = arith.mulf %23, %23 : vector<1x128xf32>
        %28 = arith.subf %26, %27 : vector<1x128xf32>
        %cst_19 = arith.constant 0.000000e+00 : f32
        %29 = vector.broadcast %cst_19 : f32 to vector<1x128xf32>
        %30 = arith.maximumf %28, %29 : vector<1x128xf32>
        %cst_20 = arith.constant 1.000000e-03 : f32
        %31 = vector.broadcast %cst_20 : f32 to vector<1x128xf32>
        %32 = arith.addf %30, %31 : vector<1x128xf32>
        %33 = math.rsqrt %32 : vector<1x128xf32>
        %c0_21 = arith.constant 0 : index
        %c0_22 = arith.constant 0 : index
        %34 = vector.load %arg4[%c0_21, %c0_22] : memref<2x128xf32, #tpu.memory_space<vmem>>, vector<1x128xf32>
        %35 = arith.mulf %34, %33 : vector<1x128xf32>
        %c1_23 = arith.constant 1 : index
        %c0_24 = arith.constant 0 : index
        %36 = vector.load %arg4[%c1_23, %c0_24] : memref<2x128xf32, #tpu.memory_space<vmem>>, vector<1x128xf32>
        %37 = arith.mulf %23, %35 : vector<1x128xf32>
        %38 = arith.subf %36, %37 : vector<1x128xf32>
        %c0_25 = arith.constant 0 : index
        %c0_26 = arith.constant 0 : index
        %39 = vector.load %arg6[%c0_25, %c0_26] : memref<2x128xf32, #tpu.memory_space<vmem>>, vector<1x128xf32>
        tpu.vector_store %arg6[%c0_25, %c0_26], %35 {strides = array<i32>} : memref<2x128xf32, #tpu.memory_space<vmem>>, vector<1x128xf32>,
        %c1_27 = arith.constant 1 : index
        %c0_28 = arith.constant 0 : index
        %40 = vector.load %arg6[%c1_27, %c0_28] : memref<2x128xf32, #tpu.memory_space<vmem>>, vector<1x128xf32>
        tpu.vector_store %arg6[%c1_27, %c0_28], %38 {strides = array<i32>} : memref<2x128xf32, #tpu.memory_space<vmem>>, vector<1x128xf32>,
      } else {
      }
      %c0_7 = arith.constant 0 : index
      %c0_8 = arith.constant 0 : index
      %12 = vector.load %arg6[%c0_7, %c0_8] : memref<2x128xf32, #tpu.memory_space<vmem>>, vector<1x128xf32>
      %13 = vector.broadcast %12 : vector<1x128xf32> to vector<128x128xf32>
      %14 = arith.mulf %2, %13 : vector<128x128xf32>
      %c1 = arith.constant 1 : index
      %c0_9 = arith.constant 0 : index
      %15 = vector.load %arg6[%c1, %c0_9] : memref<2x128xf32, #tpu.memory_space<vmem>>, vector<1x128xf32>
      %16 = vector.broadcast %15 : vector<1x128xf32> to vector<128x128xf32>
      %17 = arith.addf %14, %16 : vector<128x128xf32>
      %cst_10 = arith.constant 0.000000e+00 : f32
      %18 = vector.broadcast %cst_10 : f32 to vector<128x128xf32>
      %19 = arith.maximumf %17, %18 : vector<128x128xf32>
      %c0_11 = arith.constant 0 : index
      %c0_12 = arith.constant 0 : index
      %20 = vector.load %arg5[%c0_11, %c0_12] : memref<128x128xf32, #tpu.memory_space<vmem>>, vector<128x128xf32>
      tpu.vector_store %arg5[%c0_11, %c0_12], %19 {strides = array<i32>} : memref<128x128xf32, #tpu.memory_space<vmem>>, vector<128x128xf32>,
    } else {
    }
    return
  }
  func.func @transform_0(%arg0: i32, %arg1: i32) -> (i32, i32) {
    %c0_i32 = arith.constant 0 : i32
    %c0_i32_0 = arith.constant 0 : i32
    return %arg1, %c0_i32 : i32, i32
  }
  func.func @transform_1(%arg0: i32, %arg1: i32) -> (i32, i32) {
    %c0_i32 = arith.constant 0 : i32
    %c0_i32_0 = arith.constant 0 : i32
    %c0_i32_1 = arith.constant 0 : i32
    return %c0_i32, %c0_i32_0 : i32, i32
  }
  func.func @transform_2(%arg0: i32, %arg1: i32) -> (i32, i32) {
    %c0_i32 = arith.constant 0 : i32
    %c0_i32_0 = arith.constant 0 : i32
    %c0_i32_1 = arith.constant 0 : i32
    return %c0_i32, %c0_i32_0 : i32, i32
  }
  func.func @transform_3(%arg0: i32, %arg1: i32) -> (i32, i32) {
    %0 = arith.muli %arg1, %arg0 : i32
    %c0_i32 = arith.constant 0 : i32
    %c0_i32_0 = arith.constant 0 : i32
    return %0, %c0_i32 : i32, i32
  }
}

</mosaic_0001>

<llo_original>
// kernel: tpu_custom_call.1
$region0: #{tpu_custom_call.1}
  #allocation0 [shape = 'u32[]', space=smem, size = 0x4, offset = 0x4, fixed_abs, tag = 'smem constant byte address 0x4 - core index']
  #allocation1 [shape = 'u32[144,128]{1,0:T(1,128)}', space=vmem, size = 0x12000, scoped, tag = 'internal scratch']
  #allocation2 [shape = 'f32[2,128]{1,0:T(2,128)}', space=vmem, size = 0x400, scoped, tag = 'scratch operand']
  %s0 = inlined_call_operand.vmem [shape: bf16[512,36], index: 0, kind: input, shape index: {}]
  %s1 = inlined_call_operand.vmem [shape: bf16[36,128], index: 1, kind: input, shape index: {}]
  %s2 = inlined_call_operand.vmem [shape: f32[2,128], index: 2, kind: input, shape index: {}]
  %s3 = inlined_call_operand.hbm [shape: f32[512,128], index: 3, kind: output, shape index: {}]
  %s4 = sld [smem:[#allocation0]]
  $region61: #{tpu_custom_call.1} parent=0
    _
  %s6 = ssub.s32 1, %s4
  %s7 = scalar_select 0, %s6, %s4
  $region1: #{tpu_custom_call.1} parent=0
    #allocation3 [shape = 'u8[131072]{0}', space=vmem, size = 0x20000, scoped, tag = 'output window, operand 0']
    #allocation4 [shape = 's32[2]{0}', space=sflag, size = 0x8, scoped, tag = 'scoped memory for tpu_custom_call.1']
    %8 = vsyncpa [#allocation4], 0
    %s9 = scalar_lea.sflag [#allocation4], 1
    %10 = vsyncpa %s9, 0
    loop: start=0, step=1, limit=10
    $region2: #{tpu_custom_call.1} parent=1 // loop_pre_header
      _
    $region3: #{tpu_custom_call.1} parent=1 // loop_header
      %s12 = sphi 0, %s16
      %p13 = scmp.ge.s32.totalorder %s12, 10
      %s19 = sphi 0, %s31
      %s20 = sphi 0, %s27
      %s21 = sphi 0, %s19
      %s22 = sphi 0, %s20
      %s23 = sphi 0, %s21
      %s24 = sphi 0, %s22
      %s34 = sphi 0, %s36
      %s37 = sphi 0, %s34
      %s38 = sphi 0, %s37
      %s54 = sphi 0, %s38
      %s58 = sphi 0, %s58
      %s60 = sphi 0, %s58
      %s61 = sphi 0, %s60
      %s75 = sphi 0, %s61
      %s79 = sphi 0, %s79
      %s81 = sphi 0, %s79
      %s82 = sphi 0, %s81
      %s96 = sphi 0, %s82
      %s104 = sphi 0, %s106
      %s107 = sphi 0, %s104
      %s108 = sphi 0, %s107
      %s124 = sphi 0, %s108
    $region4: #{tpu_custom_call.1} parent=1 // loop_header_branch
      %15 = sbr.rel (%p13) target = $region8
    $region5: #{tpu_custom_call.1} parent=1 // loop_body
      %s17 = ssub.s32 %s12, 1
      %s18 = ssub.s32 %s12, 2
      %s25 = sadd.s32 1, %s20
      %p26 = scmp.ge.s32.totalorder %s25, 4
      %s27 = scalar_select %p26, 0, %s25
      %s28 = sadd.s32 1, %s19
      %s29 = scalar_select %p26, %s28, %s19
      %p30 = scmp.ge.s32.totalorder %s29, 2
      %s31 = scalar_select %p30, 0, %s29
      %s32 = ssub.s32 %s20, %s27
      %p33 = scmp.eq.s32.totalorder %s32, 0
      %s35 = sadd.s32 %s34, 1
      %s36 = scalar_select %p33, %s34, %s35
      %p39 = pneg %p33
      %p40 = scmp.eq.s32.totalorder %s12, 7
      %p41 = por %p39, %p40
      %p42 = scmp.ne.s32.totalorder %s34, %s37
      %p43 = scmp.eq.s32.totalorder %s12, 0
      %p44 = por %p42, %p43
      %p45 = scmp.ne.s32.totalorder %s34, %s37
      %p46 = scmp.eq.s32.totalorder %s17, 7
      %p47 = por %p45, %p46
      %p48 = scmp.ne.s32.totalorder %s37, %s38
      %p49 = scmp.eq.s32.totalorder %s17, 0
      %p50 = por %p48, %p49
      %p51 = scmp.ne.s32.totalorder %s37, %s38
      %p52 = scmp.eq.s32.totalorder %s18, 7
      %p53 = por %p51, %p52
      %p55 = scmp.ne.s32.totalorder %s38, %s54
      %p56 = scmp.eq.s32.totalorder %s18, 0
      %p57 = por %p55, %p56
      %s59 = sadd.s32 %s58, 1
      %p62 = scmp.eq.s32.totalorder %s12, 7
      %p63 = scmp.ne.s32.totalorder %s58, %s60
      %p64 = scmp.eq.s32.totalorder %s12, 0
      %p65 = por %p63, %p64
      %p66 = scmp.ne.s32.totalorder %s58, %s60
      %p67 = scmp.eq.s32.totalorder %s17, 7
      %p68 = por %p66, %p67
      %p69 = scmp.ne.s32.totalorder %s60, %s61
      %p70 = scmp.eq.s32.totalorder %s17, 0
      %p71 = por %p69, %p70
      %p72 = scmp.ne.s32.totalorder %s60, %s61
      %p73 = scmp.eq.s32.totalorder %s18, 7
      %p74 = por %p72, %p73
      %p76 = scmp.ne.s32.totalorder %s61, %s75
      %p77 = scmp.eq.s32.totalorder %s18, 0
      %p78 = por %p76, %p77
      %s80 = sadd.s32 %s79, 1
      %p83 = scmp.eq.s32.totalorder %s12, 7
      %p84 = scmp.ne.s32.totalorder %s79, %s81
      %p85 = scmp.eq.s32.totalorder %s12, 0
      %p86 = por %p84, %p85
      %p87 = scmp.ne.s32.totalorder %s79, %s81
      %p88 = scmp.eq.s32.totalorder %s17, 7
      %p89 = por %p87, %p88
      %p90 = scmp.ne.s32.totalorder %s81, %s82
      %p91 = scmp.eq.s32.totalorder %s17, 0
      %p92 = por %p90, %p91
      %p93 = scmp.ne.s32.totalorder %s81, %s82
      %p94 = scmp.eq.s32.totalorder %s18, 7
      %p95 = por %p93, %p94
      %p97 = scmp.ne.s32.totalorder %s82, %s96
      %p98 = scmp.eq.s32.totalorder %s18, 0
      %p99 = por %p97, %p98
      %s100 = smul.u32 %s20, %s19
      %s101 = smul.u32 %s27, %s31
      %s102 = ssub.s32 %s100, %s101
      %p103 = scmp.eq.s32.totalorder %s102, 0
      %s105 = sadd.s32 %s104, 1
      %s106 = scalar_select %p103, %s104, %s105
      %p109 = pneg %p103
      %p110 = scmp.eq.s32.totalorder %s12, 7
      %p111 = por %p109, %p110
      %p112 = scmp.ne.s32.totalorder %s104, %s107
      %p113 = scmp.eq.s32.totalorder %s12, 0
      %p114 = por %p112, %p113
      %p115 = scmp.ne.s32.totalorder %s104, %s107
      %p116 = scmp.eq.s32.totalorder %s17, 7
      %p117 = por %p115, %p116
      %p118 = scmp.ne.s32.totalorder %s107, %s108
      %p119 = scmp.eq.s32.totalorder %s17, 0
      %p120 = por %p118, %p119
      %p121 = scmp.ne.s32.totalorder %s107, %s108
      %p122 = scmp.eq.s32.totalorder %s18, 7
      %p123 = por %p121, %p122
      %p125 = scmp.ne.s32.totalorder %s108, %s124
      %p126 = scmp.eq.s32.totalorder %s18, 0
      %p127 = por %p125, %p126
      %p128 = scmp.le.s32.totalorder 1, %s12
      %p129 = scmp.lt.s32.totalorder %s12, 9
      %p130 = pnand %p128, %p129
      %p131 = pneg %p130
      // Predicated region
      $region9: #{tpu_custom_call.1} parent=5 // pred_check
        _
      $region10: #{tpu_custom_call.1} parent=5 // pred_check_branch
        %133 = sbr.rel (%p130) target = $region12
      $region11: #{tpu_custom_call.1} parent=5 // pred_region
        %s134 = ssub.s32 %s12, 1
        // Predicated region
        $region13: #{tpu_custom_call.1} parent=11 // pred_check
          %p135 = pneg %p71
        $region14: #{tpu_custom_call.1} parent=11 // pred_check_branch
          %137 = sbr.rel (%p135) target = $region16
        $region15: #{tpu_custom_call.1} parent=11 // pred_region
          _
        $region16: #{tpu_custom_call.1} parent=11 // pred_fallthru
          _
        // Predicated region
        $region17: #{tpu_custom_call.1} parent=11 // pred_check
          %p138 = pneg %p92
        $region18: #{tpu_custom_call.1} parent=11 // pred_check_branch
          %140 = sbr.rel (%p138) target = $region20
        $region19: #{tpu_custom_call.1} parent=11 // pred_region
          _
        $region20: #{tpu_custom_call.1} parent=11 // pred_fallthru
          _
      $region12: #{tpu_custom_call.1} parent=5 // pred_fallthru
        _
      %p141 = scmp.lt.s32.totalorder %s12, 8
      // Predicated region
      $region21: #{tpu_custom_call.1} parent=5 // pred_check
        %p142 = pneg %p141
      $region22: #{tpu_custom_call.1} parent=5 // pred_check_branch
        %144 = sbr.rel (%p142) target = $region24
      $region23: #{tpu_custom_call.1} parent=5 // pred_region
        // Predicated region
        $region25: #{tpu_custom_call.1} parent=23 // pred_check
          %p145 = pneg %p44
        $region26: #{tpu_custom_call.1} parent=23 // pred_check_branch
          %147 = sbr.rel (%p145) target = $region28
        $region27: #{tpu_custom_call.1} parent=23 // pred_region
          %s148 = smul.u32 16, %s20
          %p149 = scmp.lt.s32.totalorder %s148, 63
          %s150 = scalar_select %p149, %s148, 63
          %s151 = smul.addr %s150, 4
          %s152 = scalar_lea.vmem %s0, %s151
          %s153 = smul.u32 16, %s20
        $region28: #{tpu_custom_call.1} parent=23 // pred_fallthru
          _
      $region24: #{tpu_custom_call.1} parent=5 // pred_fallthru
        _
      %p154 = scmp.le.s32.totalorder 1, %s12
      %p155 = scmp.lt.s32.totalorder %s12, 9
      %p156 = pnand %p154, %p155
      %p157 = pneg %p156
      // Predicated region
      $region29: #{tpu_custom_call.1} parent=5 // pred_check
        _
      $region30: #{tpu_custom_call.1} parent=5 // pred_check_branch
        %159 = sbr.rel (%p156) target = $region32
      $region31: #{tpu_custom_call.1} parent=5 // pred_region
        %s160 = ssub.s32 %s12, 1
        %s161 = smul.u32 16, %s22
        %p162 = scmp.lt.s32.totalorder %s161, 63
        %s163 = scalar_select %p162, %s161, 63
        %s164 = smul.addr %s163, 4
        %s165 = scalar_lea.vmem %s0, %s164
        %p166 = pneg %p50
        %p167 = pneg %p47
        %p168 = pneg %p71
        %p169 = pneg %p68
        %p170 = pneg %p92
        %p171 = pneg %p89
        %p172 = pneg %p120
        %p173 = pneg %p117
        %s174 = sand.u32 %s107, 1
        %s175 = scalar_lea.sflag [#allocation4], %s174
        %s176 = sand.u32 %s107, 1
        %s177 = smul.addr %s176, 128
        %s178 = scalar_lea.vmem [#allocation3], %s177
        %s179 = smul.u32 16, %s22
        %p180 = scmp.lt.s32.totalorder %s179, 63
        %s181 = scalar_select %p180, %s179, 63
        %s182 = smul.addr %s181, 4
        %s183 = scalar_lea.vmem %s0, %s182
        %s184 = smul.u32 16, %s22
        %s185 = smul.u32 %s22, %s21
        %s186 = smul.u32 16, %s185
        %v188 = vld [vmem:[%s183] sm:$0xf]
        %v189 = vld [vmem:[%s183 + $0x4] sm:$0xf]
        %v190 = vld [vmem:[%s183 + $0x8] sm:$0xf]
        %v191 = vld [vmem:[%s183 + $0xc] sm:$0xf]
        %v192 = vld [vmem:[%s183 + $0x10] sm:$0xf]
        %v193 = vld [vmem:[%s183 + $0x14] sm:$0xf]
        %v194 = vld [vmem:[%s183 + $0x18] sm:$0xf]
        %v195 = vld [vmem:[%s183 + $0x1c] sm:$0xf]
        %v196 = vld [vmem:[%s183 + $0x20] sm:$0xf]
        %v197 = vld [vmem:[%s183 + $0x24] sm:$0xf]
        %v198 = vld [vmem:[%s183 + $0x28] sm:$0xf]
        %v199 = vld [vmem:[%s183 + $0x2c] sm:$0xf]
        %v200 = vld [vmem:[%s183 + $0x30] sm:$0xf]
        %v201 = vld [vmem:[%s183 + $0x34] sm:$0xf]
        %v202 = vld [vmem:[%s183 + $0x38] sm:$0xf]
        %v203 = vld [vmem:[%s183 + $0x3c] sm:$0xf]
        %v204 = vld [vmem:[%s1] sm:$0xf]
        %v205 = vld [vmem:[%s1 + $0x4] sm:$0xf]
        %v206 = vld [vmem:[%s1 + $0x8] sm:$0xf]
        %v207 = vld [vmem:[%s1 + $0xc] sm:$0xf]
        %v208 = vld [vmem:[%s1 + $0x10] sm:$0x3]
        %v225 = vunpack.c.l.b16 %v188
        %v226 = vunpack.c.l.b16 %v189
        %v227 = vunpack.c.l.b16 %v190
        %v228 = vunpack.c.l.b16 %v191
        %v229 = vunpack.c.l.b16 %v192
        %v230 = vunpack.c.l.b16 %v193
        %v231 = vunpack.c.l.b16 %v194
        %v232 = vunpack.c.l.b16 %v195
        %v233 = vunpack.c.l.b16 %v196
        %v234 = vunpack.c.l.b16 %v197
        %v235 = vunpack.c.l.b16 %v198
        %v236 = vunpack.c.l.b16 %v199
        %v237 = vunpack.c.l.b16 %v200
        %v238 = vunpack.c.l.b16 %v201
        %v239 = vunpack.c.l.b16 %v202
        %v240 = vunpack.c.l.b16 %v203
        %v241 = vpack.c.b16 %v226, %v225
        %v242 = vpack.c.b16 %v228, %v227
        %v243 = vpack.c.b16 %v230, %v229
        %v244 = vpack.c.b16 %v232, %v231
        %v245 = vpack.c.b16 %v234, %v233
        %v246 = vpack.c.b16 %v236, %v235
        %v247 = vpack.c.b16 %v238, %v237
        %v248 = vpack.c.b16 %v240, %v239
        %v254 = vunpack.c.l.b16 %v204
        %v255 = vunpack.c.l.b16 %v205
        %v256 = vunpack.c.l.b16 %v206
        %v257 = vunpack.c.l.b16 %v207
        %v258 = vunpack.c.l.b16 %v208
        %v259 = vpack.c.b16 %v255, %v254
        %v260 = vpack.c.b16 %v257, %v256
        %v261 = vpack.c.b16 %v258, %v258
        %vm264 = vcmask 293888
        %v266 = vsel %vm264, %v241, 0
        %v269 = vsel %vm264, %v242, 0
        %v272 = vsel %vm264, %v243, 0
        %v275 = vsel %vm264, %v244, 0
        %v278 = vsel %vm264, %v245, 0
        %v281 = vsel %vm264, %v246, 0
        %v284 = vsel %vm264, %v247, 0
        %v287 = vsel %vm264, %v248, 0
        %vm289 = vcmask 1041408
        %v291 = vsel %vm289, %v261, 0
        %293 = vmatprep.subr.bf16.mxu0 0
        %294 = vmatpush1.bf16.msra.mxu0 %v259
        %295 = vmatprep.subr.bf16.mxu0 0
        %296 = vmatpush1.bf16.msra.mxu0 %v260
        %297 = vmatprep.subr.bf16.mxu0 0
        %298 = vmatpush1.bf16.msra.mxu0 %v291
        %299 = vmatprep.subr.bf16.mxu0 0
        %300 = vmatpush1.bf16.msra.mxu0 0
        %301 = vmatprep.subr.bf16.mxu0 0
        %302 = vmatpush1.bf16.msra.mxu0 0
        %303 = vmatprep.subr.bf16.mxu0 0
        %304 = vmatpush1.bf16.msra.mxu0 0
        %305 = vmatprep.subr.bf16.mxu0 0
        %306 = vmatpush1.bf16.msra.mxu0 0
        %307 = vmatprep.subr.bf16.mxu0 0
        %308 = vmatpush1.bf16.msra.mxu0 0
        %309 = vmatprep.subr.bf16.mxu0 0
        %310 = vmatpush1.bf16.msra.mxu0 0
        %311 = vmatprep.subr.bf16.mxu0 0
        %312 = vmatpush1.bf16.msra.mxu0 0
        %313 = vmatprep.subr.bf16.mxu0 0
        %314 = vmatpush1.bf16.msra.mxu0 0
        %315 = vmatprep.subr.bf16.mxu0 0
        %316 = vmatpush1.bf16.msra.mxu0 0
        %317 = vmatprep.subr.bf16.mxu0 0
        %318 = vmatpush1.bf16.msra.mxu0 0
        %319 = vmatprep.subr.bf16.mxu0 0
        %320 = vmatpush1.bf16.msra.mxu0 0
        %321 = vmatprep.subr.bf16.mxu0 0
        %322 = vmatpush1.bf16.msra.mxu0 0
        %323 = vmatprep.subr.bf16.mxu0 0
        %324 = vmatpush1.bf16.msra.mxu0 0
        %325 = vmatprep.mubr.bf16.mxu0 0
        %326 = vmatmul.mubr.bf16.gmra.mrb[0].mxu0 %v266
        %v327 = vpop.f32.mrb[0].mxu0
        %v328 = vadd.f32 0.0, %v327
        %v329 = vpop.f32.mrb[0].mxu0
        %v330 = vpop.f32.mrb[0].mxu0
        %v331 = vadd.f32 0.0, %v330
        %v332 = vpop.f32.mrb[0].mxu0
        %333 = vmatprep.mubr.bf16.mxu0 0
        %334 = vmatmul.mubr.bf16.gmra.mrb[0].mxu0 %v269
        %v335 = vpop.f32.mrb[0].mxu0
        %v336 = vadd.f32 0.0, %v335
        %v337 = vpop.f32.mrb[0].mxu0
        %v338 = vpop.f32.mrb[0].mxu0
        %v339 = vadd.f32 0.0, %v338
        %v340 = vpop.f32.mrb[0].mxu0
        %341 = vmatprep.mubr.bf16.mxu0 0
        %342 = vmatmul.mubr.bf16.gmra.mrb[0].mxu0 %v272
        %v343 = vpop.f32.mrb[0].mxu0
        %v344 = vadd.f32 0.0, %v343
        %v345 = vpop.f32.mrb[0].mxu0
        %v346 = vpop.f32.mrb[0].mxu0
        %v347 = vadd.f32 0.0, %v346
        %v348 = vpop.f32.mrb[0].mxu0
        %349 = vmatprep.mubr.bf16.mxu0 0
        %350 = vmatmul.mubr.bf16.gmra.mrb[0].mxu0 %v275
        %v351 = vpop.f32.mrb[0].mxu0
        %v352 = vadd.f32 0.0, %v351
        %v353 = vpop.f32.mrb[0].mxu0
        %v354 = vpop.f32.mrb[0].mxu0
        %v355 = vadd.f32 0.0, %v354
        %v356 = vpop.f32.mrb[0].mxu0
        %357 = vmatprep.mubr.bf16.mxu0 0
        %358 = vmatmul.mubr.bf16.gmra.mrb[0].mxu0 %v278
        %v359 = vpop.f32.mrb[0].mxu0
        %v360 = vadd.f32 0.0, %v359
        %v361 = vpop.f32.mrb[0].mxu0
        %v362 = vpop.f32.mrb[0].mxu0
        %v363 = vadd.f32 0.0, %v362
        %v364 = vpop.f32.mrb[0].mxu0
        %365 = vmatprep.mubr.bf16.mxu0 0
        %366 = vmatmul.mubr.bf16.gmra.mrb[0].mxu0 %v281
        %v367 = vpop.f32.mrb[0].mxu0
        %v368 = vadd.f32 0.0, %v367
        %v369 = vpop.f32.mrb[0].mxu0
        %v370 = vpop.f32.mrb[0].mxu0
        %v371 = vadd.f32 0.0, %v370
        %v372 = vpop.f32.mrb[0].mxu0
        %373 = vmatprep.mubr.bf16.mxu0 0
        %374 = vmatmul.mubr.bf16.gmra.mrb[0].mxu0 %v284
        %v375 = vpop.f32.mrb[0].mxu0
        %v376 = vadd.f32 0.0, %v375
        %v377 = vpop.f32.mrb[0].mxu0
        %v378 = vpop.f32.mrb[0].mxu0
        %v379 = vadd.f32 0.0, %v378
        %v380 = vpop.f32.mrb[0].mxu0
        %381 = vmatprep.mubr.bf16.mxu0 0
        %382 = vmatmul.mubr.bf16.gmra.mrb[0].mxu0 %v287
        %v383 = vpop.f32.mrb[0].mxu0
        %v384 = vadd.f32 0.0, %v383
        %v385 = vpop.f32.mrb[0].mxu0
        %v386 = vpop.f32.mrb[0].mxu0
        %v387 = vadd.f32 0.0, %v386
        %v388 = vpop.f32.mrb[0].mxu0
        %389 = vdwg.mxu0
        %p390 = scmp.eq.s32.totalorder %s21, 0
        // Predicated region
        $region33: #{tpu_custom_call.1} parent=31 // pred_check
          %p391 = pneg %p390
        $region34: #{tpu_custom_call.1} parent=31 // pred_check_branch
          %393 = sbr.rel (%p391) target = $region36
        $region35: #{tpu_custom_call.1} parent=31 // pred_region
          %p394 = scmp.eq.s32.totalorder %s22, 0
          // Predicated region
          $region37: #{tpu_custom_call.1} parent=35 // pred_check
            %p395 = pneg %p394
          $region38: #{tpu_custom_call.1} parent=35 // pred_check_branch
            %397 = sbr.rel (%p395) target = $region40
          $region39: #{tpu_custom_call.1} parent=35 // pred_region
            %398 = vst [vmem:[#allocation2] sm:$0x3] 0.0
          $region40: #{tpu_custom_call.1} parent=35 // pred_fallthru
            _
          %v399 = vadd.f32 %v328, %v331
          %v400 = vadd.f32 %v399, %v336
          %v401 = vadd.f32 %v400, %v339
          %v402 = vadd.f32 %v401, %v344
          %v403 = vadd.f32 %v402, %v347
          %v404 = vadd.f32 %v403, %v352
          %v405 = vadd.f32 %v404, %v355
          %v406 = vadd.f32 %v405, %v360
          %v407 = vadd.f32 %v406, %v363
          %v408 = vadd.f32 %v407, %v368
          %v409 = vadd.f32 %v408, %v371
          %v410 = vadd.f32 %v409, %v376
          %v411 = vadd.f32 %v410, %v379
          %v412 = vadd.f32 %v411, %v384
          %v413 = vadd.f32 %v412, %v387
          %v414 = vrot.slane %v413, 4
          %v415 = vadd.f32 %v413, %v414
          %v416 = vrot.slane %v415, 2
          %v417 = vadd.f32 %v415, %v416
          %v418 = vrot.slane %v417, 1
          %v419 = vadd.f32 %v417, %v418
          %v420 = vmul.f32 %v328, %v328
          %v421 = vmul.f32 %v331, %v331
          %v422 = vmul.f32 %v336, %v336
          %v423 = vmul.f32 %v339, %v339
          %v424 = vmul.f32 %v344, %v344
          %v425 = vmul.f32 %v347, %v347
          %v426 = vmul.f32 %v352, %v352
          %v427 = vmul.f32 %v355, %v355
          %v428 = vmul.f32 %v360, %v360
          %v429 = vmul.f32 %v363, %v363
          %v430 = vmul.f32 %v368, %v368
          %v431 = vmul.f32 %v371, %v371
          %v432 = vmul.f32 %v376, %v376
          %v433 = vmul.f32 %v379, %v379
          %v434 = vmul.f32 %v384, %v384
          %v435 = vmul.f32 %v387, %v387
          %v436 = vadd.f32 %v420, %v421
          %v437 = vadd.f32 %v436, %v422
          %v438 = vadd.f32 %v437, %v423
          %v439 = vadd.f32 %v438, %v424
          %v440 = vadd.f32 %v439, %v425
          %v441 = vadd.f32 %v440, %v426
          %v442 = vadd.f32 %v441, %v427
          %v443 = vadd.f32 %v442, %v428
          %v444 = vadd.f32 %v443, %v429
          %v445 = vadd.f32 %v444, %v430
          %v446 = vadd.f32 %v445, %v431
          %v447 = vadd.f32 %v446, %v432
          %v448 = vadd.f32 %v447, %v433
          %v449 = vadd.f32 %v448, %v434
          %v450 = vadd.f32 %v449, %v435
          %v451 = vrot.slane %v450, 4
          %v452 = vadd.f32 %v450, %v451
          %v453 = vrot.slane %v452, 2
          %v454 = vadd.f32 %v452, %v453
          %v455 = vrot.slane %v454, 1
          %v456 = vadd.f32 %v454, %v455
          %v457 = vld [vmem:[#allocation2] sm:$0x3]
          %vm458 = vcmask 1040384
          %v459 = vsel %vm458, %v419, %v456
          %v460 = vadd.f32 %v457, %v459
          %461 = vst [vmem:[#allocation2] sm:$0x3] %v460
        $region36: #{tpu_custom_call.1} parent=31 // pred_fallthru
          _
        %p462 = scmp.eq.s32.totalorder %s21, 1
        // Predicated region
        $region41: #{tpu_custom_call.1} parent=31 // pred_check
          %p463 = pneg %p462
        $region42: #{tpu_custom_call.1} parent=31 // pred_check_branch
          %465 = sbr.rel (%p463) target = $region44
        $region43: #{tpu_custom_call.1} parent=31 // pred_region
          %p466 = scmp.eq.s32.totalorder %s22, 0
          // Predicated region
          $region45: #{tpu_custom_call.1} parent=43 // pred_check
            %p467 = pneg %p466
          $region46: #{tpu_custom_call.1} parent=43 // pred_check_branch
            %469 = sbr.rel (%p467) target = $region48
          $region47: #{tpu_custom_call.1} parent=43 // pred_region
            %v470 = vld [vmem:[#allocation2] sm:$0x1]
            %v471 = vmul.f32 %v470, 0.001953125
            %v472 = vld [vmem:[#allocation2 + $0x1] sm:$0x1]
            %v473 = vmul.f32 %v472, 0.001953125
            %v474 = vmul.f32 %v471, %v471
            %v475 = vsub.f32 %v473, %v474
            %v476 = vmax.f32 %v475, 0.0
            %v477 = vadd.f32 %v476, 0.001
            %v478 = vrsqrt.pop %v477
            %v479 = vld [vmem:[%s2] sm:$0x1]
            %v480 = vmul.f32 %v479, %v478
            %v481 = vld [vmem:[%s2 + $0x1] sm:$0x1]
            %v482 = vmul.f32 %v471, %v480
            %v483 = vsub.f32 %v481, %v482
            %484 = vst [vmem:[#allocation2] sm:$0x1] %v480
            %485 = vst [vmem:[#allocation2 + $0x1] sm:$0x1] %v483
          $region48: #{tpu_custom_call.1} parent=43 // pred_fallthru
            _
          %v486 = vld [vmem:[#allocation2] sm:$0x1]
          %v487 = vlaneseq
          %v488 = vshrl.u32 %v487, 7
          %v489 = vsub.s32 0, %v488
          %v490 = vrot.slane %v486, %v489
          %v491 = vmul.f32 %v328, %v490
          %v492 = vmul.f32 %v331, %v490
          %v493 = vmul.f32 %v336, %v490
          %v494 = vmul.f32 %v339, %v490
          %v495 = vmul.f32 %v344, %v490
          %v496 = vmul.f32 %v347, %v490
          %v497 = vmul.f32 %v352, %v490
          %v498 = vmul.f32 %v355, %v490
          %v499 = vmul.f32 %v360, %v490
          %v500 = vmul.f32 %v363, %v490
          %v501 = vmul.f32 %v368, %v490
          %v502 = vmul.f32 %v371, %v490
          %v503 = vmul.f32 %v376, %v490
          %v504 = vmul.f32 %v379, %v490
          %v505 = vmul.f32 %v384, %v490
          %v506 = vmul.f32 %v387, %v490
          %v507 = vld [vmem:[#allocation2 + $0x1] sm:$0x1]
          %v508 = vlaneseq
          %v509 = vshrl.u32 %v508, 7
          %v510 = vsub.s32 0, %v509
          %v511 = vrot.slane %v507, %v510
          %v512 = vadd.f32 %v491, %v511
          %v513 = vadd.f32 %v492, %v511
          %v514 = vadd.f32 %v493, %v511
          %v515 = vadd.f32 %v494, %v511
          %v516 = vadd.f32 %v495, %v511
          %v517 = vadd.f32 %v496, %v511
          %v518 = vadd.f32 %v497, %v511
          %v519 = vadd.f32 %v498, %v511
          %v520 = vadd.f32 %v499, %v511
          %v521 = vadd.f32 %v500, %v511
          %v522 = vadd.f32 %v501, %v511
          %v523 = vadd.f32 %v502, %v511
          %v524 = vadd.f32 %v503, %v511
          %v525 = vadd.f32 %v504, %v511
          %v526 = vadd.f32 %v505, %v511
          %v527 = vadd.f32 %v506, %v511
          %v528 = vmax.f32 %v512, 0.0
          %v529 = vmax.f32 %v513, 0.0
          %v530 = vmax.f32 %v514, 0.0
          %v531 = vmax.f32 %v515, 0.0
          %v532 = vmax.f32 %v516, 0.0
          %v533 = vmax.f32 %v517, 0.0
          %v534 = vmax.f32 %v518, 0.0
          %v535 = vmax.f32 %v519, 0.0
          %v536 = vmax.f32 %v520, 0.0
          %v537 = vmax.f32 %v521, 0.0
          %v538 = vmax.f32 %v522, 0.0
          %v539 = vmax.f32 %v523, 0.0
          %v540 = vmax.f32 %v524, 0.0
          %v541 = vmax.f32 %v525, 0.0
          %v542 = vmax.f32 %v526, 0.0
          %v543 = vmax.f32 %v527, 0.0
          %544 = vst [vmem:[%s178] sm:$0xff] %v528
          %545 = vst [vmem:[%s178 + $0x8] sm:$0xff] %v529
          %546 = vst [vmem:[%s178 + $0x10] sm:$0xff] %v530
          %547 = vst [vmem:[%s178 + $0x18] sm:$0xff] %v531
          %548 = vst [vmem:[%s178 + $0x20] sm:$0xff] %v532
          %549 = vst [vmem:[%s178 + $0x28] sm:$0xff] %v533
          %550 = vst [vmem:[%s178 + $0x30] sm:$0xff] %v534
          %551 = vst [vmem:[%s178 + $0x38] sm:$0xff] %v535
          %552 = vst [vmem:[%s178 + $0x40] sm:$0xff] %v536
          %553 = vst [vmem:[%s178 + $0x48] sm:$0xff] %v537
          %554 = vst [vmem:[%s178 + $0x50] sm:$0xff] %v538
          %555 = vst [vmem:[%s178 + $0x58] sm:$0xff] %v539
          %556 = vst [vmem:[%s178 + $0x60] sm:$0xff] %v540
          %557 = vst [vmem:[%s178 + $0x68] sm:$0xff] %v541
          %558 = vst [vmem:[%s178 + $0x70] sm:$0xff] %v542
          %559 = vst [vmem:[%s178 + $0x78] sm:$0xff] %v543
        $region44: #{tpu_custom_call.1} parent=31 // pred_fallthru
          _
        %s560 = sand.u32 %s107, 1
        %s561 = scalar_lea.sflag [#allocation4], %s560
        %s562 = sand.u32 %s107, 1
        %s563 = smul.addr %s562, 128
        %s564 = scalar_lea.vmem [#allocation3], %s563
        // Predicated region
        $region49: #{tpu_custom_call.1} parent=31 // pred_check
          %p565 = pneg %p117
        $region50: #{tpu_custom_call.1} parent=31 // pred_check_branch
          %567 = sbr.rel (%p565) target = $region52
        $region51: #{tpu_custom_call.1} parent=31 // pred_region
          %s568 = smul.u32 %s22, %s21
          %s569 = smul.u32 16, %s568
          %s571 = ssub.s32 2048, 2048
          %572 = vsyncadd %s561, %s571
          %s573 = smul.addr %s569, 128
          %s574 = scalar_lea.hbm %s3, %s573
          %s575 = sshll.u32 %s564, 4
          %s576 = int_to_ptr.vmem [resolvable:$true] %s575
          %581 = dma.vmem_to_hbm [thread:$0]  %s576, 2048, %s574, %s561, 128, 128, 8
        $region52: #{tpu_custom_call.1} parent=31 // pred_fallthru
          _
      $region32: #{tpu_custom_call.1} parent=5 // pred_fallthru
        _
      %p582 = scmp.le.s32.totalorder 2, %s12
      // Predicated region
      $region53: #{tpu_custom_call.1} parent=5 // pred_check
        %p583 = pneg %p582
      $region54: #{tpu_custom_call.1} parent=5 // pred_check_branch
        %585 = sbr.rel (%p583) target = $region56
      $region55: #{tpu_custom_call.1} parent=5 // pred_region
        %s586 = ssub.s32 %s12, 2
        // Predicated region
        $region57: #{tpu_custom_call.1} parent=55 // pred_check
          %p587 = pneg %p123
        $region58: #{tpu_custom_call.1} parent=55 // pred_check_branch
          %589 = sbr.rel (%p587) target = $region60
        $region59: #{tpu_custom_call.1} parent=55 // pred_region
          %s590 = sand.u32 %s108, 1
          %s591 = scalar_lea.sflag [#allocation4], %s590
          %s592 = sand.u32 %s108, 1
          %s593 = smul.addr %s592, 128
          %s594 = scalar_lea.vmem [#allocation3], %s593
          %595 = dma.done %s591, 2048
        $region60: #{tpu_custom_call.1} parent=55 // pred_fallthru
          _
      $region56: #{tpu_custom_call.1} parent=5 // pred_fallthru
        _
    $region6: #{tpu_custom_call.1} parent=1 // loop_footer
      %s16 = sadd.s32 1, %s12
    $region7: #{tpu_custom_call.1} parent=1 // loop_footer_branch
      %11 = sbr.rel target = $region3
    $region8: #{tpu_custom_call.1} parent=1 // loop_exit
      _
    %596 = vsyncpa [#allocation4], 1
    %s597 = scalar_lea.sflag [#allocation4], 1
    %598 = vsyncpa %s597, 1

</llo_original>
